<compile_context>
chip_gen: v7x
topology: tpu7x:2x2x1
jax: 0.10.0
libtpu: 0.0.40
codegen_flags: <defaults>
</compile_context>

<pallas_src>
import functools

import jax
import jax.numpy as jnp
from jax.experimental import pallas as pl
from jax.experimental.pallas import tpu as pltpu


def _mean_pool_kernel(x_ref, o_ref, acc_ref, *, inv_t, two_stage):
    # x_ref:   (bm, bt, bn) input tile in VMEM
    # o_ref:   (bm, bn)     output tile (resident across the T grid axis)
    # acc_ref: (bm, acc_rows, bn) f32 accumulator scratch (resident across T)
    t = pl.program_id(2)

    @pl.when(t == 0)
    def _():
        acc_ref[...] = jnp.zeros_like(acc_ref)

    x = x_ref[...].astype(jnp.float32)
    bm, bt, bn = x.shape
    if two_stage:
        # Steady state: whole-vreg VALU adds only — no per-step cross-sublane
        # reduce, no accumulator relayout (bt % 8 == 0 by construction; the
        # reshape splits the sublane axis on an 8-boundary, layout-preserving).
        acc_ref[...] += jnp.sum(x.reshape(bm, bt // 8, 8, bn), axis=1)
    else:
        acc_ref[...] += jnp.sum(x, axis=1, keepdims=True)

    @pl.when(t == pl.num_programs(2) - 1)
    def _():
        # Single cross-sublane reduce + 1/T scale + cast, once per output tile.
        o_ref[...] = (jnp.sum(acc_ref[...], axis=1) * inv_t).astype(o_ref.dtype)


def _largest_tile(n, target, multiple):
    """Largest divisor of n that is <= target and a multiple of `multiple`,
    or the full axis n when n <= target or no such divisor exists."""
    if n <= target:
        return n
    start = (int(target) // multiple) * multiple
    for cand in range(start, 0, -multiple):
        if n % cand == 0:
            return cand
    # No legal divisor-tile: fall back to a full-axis block (always layout
    # legal; may exceed the block budget for pathological prime axes).
    return n


def _split_tile(n, tile, multiple):
    """Largest legal tile (divisor of n, multiple of `multiple`) strictly
    smaller than `tile`, or None if no such tile exists."""
    start = ((tile - 1) // multiple) * multiple
    for cand in range(start, 0, -multiple):
        if n % cand == 0:
            return cand
    return None


def pooling_aggregator(feats):
    """Mean-pool over axis 1 of feats [B, T, D] -> [B, D] with a Pallas kernel."""
    B, T, D = feats.shape
    itemsize = jnp.dtype(feats.dtype).itemsize
    # Sublane multiple per dtype width (f32: 8, bf16: 16, int8/fp8: 32).
    sub_mult = {1: 32, 2: 16, 4: 8}.get(itemsize, 8)

    # Chip-aware budgets: larger blocks where VMEM allows (v5e/v6e: 128 MiB
    # physical; v7x: 64 MiB per TensorCore).
    try:
        vmem_cap = int(pltpu.get_tpu_info().vmem_capacity_bytes)
    except Exception:
        vmem_cap = 64 * 1024 * 1024
    if vmem_cap >= 96 * 1024 * 1024:
        budget = 16 * 1024 * 1024          # per input block (v5e / v6e)
        limit_cap = 96 * 1024 * 1024
    else:
        budget = 12 * 1024 * 1024          # per input block (v7x)
        limit_cap = 48 * 1024 * 1024
    limit_cap = min(limit_cap, int(0.75 * vmem_cap))

    # Sub-32-bit inputs materialize an f32 upcast of the block inside the
    # kernel; budget for it so the declared VMEM limit is honest.
    budget_itemsize = itemsize + (4 if itemsize < 4 else 0)

    # --- Tile derivation: lane (bn) first, then T (bt), then batch (bm). ---
    bm_floor = min(B, sub_mult)
    bt_floor = min(T, sub_mult)

    # Lane tile: prefer full D (feats is row-major, so full-D blocks give the
    # longest contiguous DMA runs and lane-dense unmasked stores).
    bn = D
    if D > 128 and D * bm_floor * bt_floor * budget_itemsize > budget:
        bn_cap = max(128, budget // (bm_floor * bt_floor * budget_itemsize))
        bn = _largest_tile(D, bn_cap, 128)

    # T tile: full T whenever it fits at the minimal batch depth.
    bt_cap = max(sub_mult, budget // max(1, bm_floor * bn * budget_itemsize))
    bt = _largest_tile(T, bt_cap, sub_mult)

    # Batch tile: grow to fill the remaining block budget (multi-MiB blocks
    # amortize the ~0.35 us per-grid-step overhead).
    bm_cap = max(sub_mult, budget // max(1, bt * bn * budget_itemsize))
    bm = _largest_tile(B, bm_cap, sub_mult)

    # v7x has 2 TensorCores: ensure the product of the "parallel" grid axes is
    # >= 2 when a legal smaller tile exists (prefer splitting the batch tile to
    # keep full-D DMA rows). Harmless on single-TC v5e/v6e.
    if (B // bm) * (D // bn) < 2:
        new_bm = _split_tile(B, bm, sub_mult)
        if new_bm is not None:
            bm = new_bm
        else:
            new_bn = _split_tile(D, bn, 128)
            if new_bn is not None:
                bn = new_bn

    grid = (B // bm, D // bn, T // bt)

    # Two-stage reduction needs the T tile to split into sublane groups of 8.
    two_stage = (bt % 8 == 0)
    acc_rows = 8 if two_stage else 1

    in_block = bm * bt * bn * itemsize
    upcast_tmp = bm * bt * bn * 4 if itemsize < 4 else 0
    out_block = bm * bn * itemsize
    acc_bytes = bm * acc_rows * bn * 4
    vmem_needed = 2 * in_block + upcast_tmp + 2 * out_block + acc_bytes
    vmem_limit = int(min(limit_cap,
                         max(16 * 1024 * 1024, int(1.4 * vmem_needed))))

    kernel = functools.partial(_mean_pool_kernel, inv_t=1.0 / T,
                               two_stage=two_stage)

    cost = pl.CostEstimate(
        flops=B * T * D,
        transcendentals=0,
        bytes_accessed=B * T * D * itemsize + B * D * itemsize,
    )

    return pl.pallas_call(
        kernel,
        out_shape=jax.ShapeDtypeStruct((B, D), feats.dtype),
        grid_spec=pltpu.PrefetchScalarGridSpec(
            num_scalar_prefetch=0,
            grid=grid,
            in_specs=[pl.BlockSpec((bm, bt, bn), lambda b, d, t: (b, t, d))],
            out_specs=pl.BlockSpec((bm, bn), lambda b, d, t: (b, d)),
            scratch_shapes=[pltpu.VMEM((bm, acc_rows, bn), jnp.float32)],
        ),
        compiler_params=pltpu.CompilerParams(
            dimension_semantics=("parallel", "parallel", "arbitrary"),
            vmem_limit_bytes=vmem_limit,
        ),
        cost_estimate=cost,
    )(feats)


if __name__ == "__main__":
    key = jax.random.PRNGKey(0)

    # Primary check: f32, small shapes consistent with the module.
    B, T, D = 2, 8, 256
    feats = jax.random.normal(key, (B, T, D), dtype=jnp.float32)
    out = jax.block_until_ready(pooling_aggregator(feats))
    ref = jnp.mean(feats, axis=1)
    assert out.shape == (B, D)
    assert jnp.allclose(out, ref, atol=1e-5, rtol=1e-5)

    # Secondary check: bf16 features (dtype-aware sublane tiling path).
    k2 = jax.random.PRNGKey(1)
    feats_bf16 = jax.random.normal(k2, (4, 16, 384), dtype=jnp.bfloat16)
    out_bf16 = jax.block_until_ready(pooling_aggregator(feats_bf16))
    ref_bf16 = jnp.mean(feats_bf16.astype(jnp.float32), axis=1)
    assert out_bf16.shape == (4, 384)
    assert jnp.allclose(out_bf16.astype(jnp.float32), ref_bf16,
                        atol=1e-2, rtol=1e-2)

    print("KERNEL_OK")
</pallas_src>

<mosaic_0001>
module attributes {stable_mosaic.version = 11 : i64} {
  func.func @_mean_pool_kernel(%arg0: i32, %arg1: i32, %arg2: i32, %arg3: memref<2x8x128xf32, #tpu.memory_space<vmem>>, %arg4: memref<2x128xf32, #tpu.memory_space<vmem>>, %arg5: memref<2x8x128xf32, #tpu.memory_space<vmem>>) attributes {dimension_semantics = [#tpu.dimension_semantics<parallel>, #tpu.dimension_semantics<parallel>, #tpu.dimension_semantics<arbitrary>], iteration_bounds = array<i64: 1, 2, 1>, scalar_prefetch = 0 : i64, scratch_operands = 1 : i64, tpu.core_type = #tpu.core_type<tc>, window_params = [{transform_indices = @transform_0, window_bounds = array<i64: 2, 8, 128>}, {transform_indices = @transform_1, window_bounds = array<i64: 2, 128>}]} {
    %c0_i32 = arith.constant 0 : i32
    %0 = arith.cmpi eq, %arg2, %c0_i32 : i32
    %1 = arith.extui %0 : i1 to i32
    %c0_i32_0 = arith.constant 0 : i32
    %2 = arith.cmpi ne, %1, %c0_i32_0 : i32
    scf.if %2 {
      %cst_11 = arith.constant 0.000000e+00 : f32
      %12 = vector.broadcast %cst_11 : f32 to vector<2x8x128xf32>
      %c0_12 = arith.constant 0 : index
      %c0_13 = arith.constant 0 : index
      %c0_14 = arith.constant 0 : index
      %13 = vector.load %arg5[%c0_12, %c0_13, %c0_14] : memref<2x8x128xf32, #tpu.memory_space<vmem>>, vector<2x8x128xf32>
      tpu.vector_store %arg5[%c0_12, %c0_13, %c0_14], %12 {strides = array<i32>} : memref<2x8x128xf32, #tpu.memory_space<vmem>>, vector<2x8x128xf32>,
    } else {
    }
    %c0 = arith.constant 0 : index
    %c0_1 = arith.constant 0 : index
    %c0_2 = arith.constant 0 : index
    %3 = vector.load %arg3[%c0, %c0_1, %c0_2] : memref<2x8x128xf32, #tpu.memory_space<vmem>>, vector<2x8x128xf32>
    %c0_3 = arith.constant 0 : index
    %c0_4 = arith.constant 0 : index
    %c0_5 = arith.constant 0 : index
    %4 = vector.load %arg5[%c0_3, %c0_4, %c0_5] : memref<2x8x128xf32, #tpu.memory_space<vmem>>, vector<2x8x128xf32>
    %5 = vector.shape_cast %3 : vector<2x8x128xf32> to vector<2x1x8x128xf32>
    %cst = arith.constant dense<0.000000e+00> : vector<2x8x128xf32>
    %6 = vector.multi_reduction <add>, %5, %cst [1] : vector<2x1x8x128xf32> to vector<2x8x128xf32>
    %7 = arith.addf %4, %6 : vector<2x8x128xf32>
    %c0_6 = arith.constant 0 : index
    %c0_7 = arith.constant 0 : index
    %c0_8 = arith.constant 0 : index
    %8 = vector.load %arg5[%c0_6, %c0_7, %c0_8] : memref<2x8x128xf32, #tpu.memory_space<vmem>>, vector<2x8x128xf32>
    tpu.vector_store %arg5[%c0_6, %c0_7, %c0_8], %7 {strides = array<i32>} : memref<2x8x128xf32, #tpu.memory_space<vmem>>, vector<2x8x128xf32>,
    %c0_i32_9 = arith.constant 0 : i32
    %9 = arith.cmpi eq, %arg2, %c0_i32_9 : i32
    %10 = arith.extui %9 : i1 to i32
    %c0_i32_10 = arith.constant 0 : i32
    %11 = arith.cmpi ne, %10, %c0_i32_10 : i32
    scf.if %11 {
      %c0_11 = arith.constant 0 : index
      %c0_12 = arith.constant 0 : index
      %c0_13 = arith.constant 0 : index
      %12 = vector.load %arg5[%c0_11, %c0_12, %c0_13] : memref<2x8x128xf32, #tpu.memory_space<vmem>>, vector<2x8x128xf32>
      %cst_14 = arith.constant dense<0.000000e+00> : vector<2x128xf32>
      %13 = vector.multi_reduction <add>, %12, %cst_14 [1] : vector<2x8x128xf32> to vector<2x128xf32>
      %cst_15 = arith.constant 1.250000e-01 : f32
      %14 = vector.broadcast %cst_15 : f32 to vector<2x128xf32>
      %15 = arith.mulf %13, %14 : vector<2x128xf32>
      %c0_16 = arith.constant 0 : index
      %c0_17 = arith.constant 0 : index
      %16 = vector.load %arg4[%c0_16, %c0_17] : memref<2x128xf32, #tpu.memory_space<vmem>>, vector<2x128xf32>
      tpu.vector_store %arg4[%c0_16, %c0_17], %15 {strides = array<i32>} : memref<2x128xf32, #tpu.memory_space<vmem>>, vector<2x128xf32>,
    } else {
    }
    return
  }
  func.func @transform_0(%arg0: i32, %arg1: i32, %arg2: i32) -> (i32, i32, i32) {
    %c0_i32 = arith.constant 0 : i32
    return %arg0, %arg2, %arg1 : i32, i32, i32
  }
  func.func @transform_1(%arg0: i32, %arg1: i32, %arg2: i32) -> (i32, i32) {
    %c0_i32 = arith.constant 0 : i32
    return %arg0, %arg1 : i32, i32
  }
}

</mosaic_0001>

<llo_original>
// kernel: tpu_custom_call.1
$region0: #{tpu_custom_call.1}
  #allocation0 [shape = 'u32[]', space=smem, size = 0x4, offset = 0x4, fixed_abs, tag = 'smem constant byte address 0x4 - core index']
  #allocation1 [shape = 'u32[144,128]{1,0:T(1,128)}', space=vmem, size = 0x12000, scoped, tag = 'internal scratch']
  #allocation2 [shape = 'f32[2,8,128]{2,1,0:T(8,128)}', space=vmem, size = 0x2000, scoped, tag = 'scratch operand']
  %s0 = inlined_call_operand.hbm [shape: f32[2,8,256], index: 0, kind: input, shape index: {}]
  %s1 = inlined_call_operand.hbm [shape: f32[2,256], index: 1, kind: output, shape index: {}]
  %s2 = sld [smem:[#allocation0]]
  $region49: #{tpu_custom_call.1} parent=0
    _
  %s4 = ssub.s32 1, %s2
  %s5 = scalar_select 0, %s4, %s2
  $region1: #{tpu_custom_call.1} parent=0
    #allocation3 [shape = 'u8[16384]{0}', space=vmem, size = 0x4000, scoped, tag = 'input window, operand 0']
    #allocation4 [shape = 's32[2]{0}', space=sflag, size = 0x8, scoped, tag = 'scoped memory for tpu_custom_call.1']
    #allocation5 [shape = 's32[2]{0}', space=sflag, size = 0x8, scoped, tag = 'scoped memory for tpu_custom_call.1']
    #allocation6 [shape = 'u8[2048]{0}', space=vmem, size = 0x800, scoped, tag = 'output window, operand 0']
    %6 = vsyncpa [#allocation4], 0
    %s7 = scalar_lea.sflag [#allocation4], 1
    %8 = vsyncpa %s7, 0
    %9 = vsyncpa [#allocation5], 0
    %s10 = scalar_lea.sflag [#allocation5], 1
    %11 = vsyncpa %s10, 0
    loop: start=0, step=1, limit=4
    $region2: #{tpu_custom_call.1} parent=1 // loop_pre_header
      _
    $region3: #{tpu_custom_call.1} parent=1 // loop_header
      %s13 = sphi 0, %s17
      %p14 = scmp.ge.s32.totalorder %s13, 4
      %s20 = sphi 0, %s39
      %s21 = sphi 0, %s35
      %s22 = sphi 0, %s31
      %s23 = sphi 0, %s20
      %s24 = sphi 0, %s21
      %s25 = sphi 0, %s22
      %s26 = sphi 0, %s23
      %s27 = sphi 0, %s24
      %s28 = sphi 0, %s25
      %s46 = sphi 0, %s48
      %s49 = sphi 0, %s46
      %s50 = sphi 0, %s49
      %s66 = sphi 0, %s50
      %s74 = sphi 0, %s76
      %s77 = sphi 0, %s74
      %s78 = sphi 0, %s77
      %s94 = sphi 0, %s78
    $region4: #{tpu_custom_call.1} parent=1 // loop_header_branch
      %16 = sbr.rel (%p14) target = $region8
    $region5: #{tpu_custom_call.1} parent=1 // loop_body
      %s18 = ssub.s32 %s13, 1
      %s19 = ssub.s32 %s13, 2
      %s29 = sadd.s32 1, %s22
      %p30 = scmp.ge.s32.totalorder %s29, 1
      %s31 = scalar_select %p30, 0, %s29
      %s32 = sadd.s32 1, %s21
      %s33 = scalar_select %p30, %s32, %s21
      %p34 = scmp.ge.s32.totalorder %s33, 2
      %s35 = scalar_select %p34, 0, %s33
      %s36 = sadd.s32 1, %s20
      %s37 = scalar_select %p34, %s36, %s20
      %p38 = scmp.ge.s32.totalorder %s37, 1
      %s39 = scalar_select %p38, 0, %s37
      %s40 = ssub.s32 %s20, %s39
      %s41 = ssub.s32 %s22, %s31
      %s42 = sor.u32 %s40, %s41
      %s43 = ssub.s32 %s21, %s35
      %s44 = sor.u32 %s42, %s43
      %p45 = scmp.eq.s32.totalorder %s44, 0
      %s47 = sadd.s32 %s46, 1
      %s48 = scalar_select %p45, %s46, %s47
      %p51 = pneg %p45
      %p52 = scmp.eq.s32.totalorder %s13, 1
      %p53 = por %p51, %p52
      %p54 = scmp.ne.s32.totalorder %s46, %s49
      %p55 = scmp.eq.s32.totalorder %s13, 0
      %p56 = por %p54, %p55
      %p57 = scmp.ne.s32.totalorder %s46, %s49
      %p58 = scmp.eq.s32.totalorder %s18, 1
      %p59 = por %p57, %p58
      %p60 = scmp.ne.s32.totalorder %s49, %s50
      %p61 = scmp.eq.s32.totalorder %s18, 0
      %p62 = por %p60, %p61
      %p63 = scmp.ne.s32.totalorder %s49, %s50
      %p64 = scmp.eq.s32.totalorder %s19, 1
      %p65 = por %p63, %p64
      %p67 = scmp.ne.s32.totalorder %s50, %s66
      %p68 = scmp.eq.s32.totalorder %s19, 0
      %p69 = por %p67, %p68
      %s70 = ssub.s32 %s20, %s39
      %s71 = ssub.s32 %s21, %s35
      %s72 = sor.u32 %s70, %s71
      %p73 = scmp.eq.s32.totalorder %s72, 0
      %s75 = sadd.s32 %s74, 1
      %s76 = scalar_select %p73, %s74, %s75
      %p79 = pneg %p73
      %p80 = scmp.eq.s32.totalorder %s13, 1
      %p81 = por %p79, %p80
      %p82 = scmp.ne.s32.totalorder %s74, %s77
      %p83 = scmp.eq.s32.totalorder %s13, 0
      %p84 = por %p82, %p83
      %p85 = scmp.ne.s32.totalorder %s74, %s77
      %p86 = scmp.eq.s32.totalorder %s18, 1
      %p87 = por %p85, %p86
      %p88 = scmp.ne.s32.totalorder %s77, %s78
      %p89 = scmp.eq.s32.totalorder %s18, 0
      %p90 = por %p88, %p89
      %p91 = scmp.ne.s32.totalorder %s77, %s78
      %p92 = scmp.eq.s32.totalorder %s19, 1
      %p93 = por %p91, %p92
      %p95 = scmp.ne.s32.totalorder %s78, %s94
      %p96 = scmp.eq.s32.totalorder %s19, 0
      %p97 = por %p95, %p96
      %p98 = scmp.le.s32.totalorder 1, %s13
      %p99 = scmp.lt.s32.totalorder %s13, 3
      %p100 = pnand %p98, %p99
      %p101 = pneg %p100
      // Predicated region
      $region9: #{tpu_custom_call.1} parent=5 // pred_check
        _
      $region10: #{tpu_custom_call.1} parent=5 // pred_check_branch
        %103 = sbr.rel (%p100) target = $region12
      $region11: #{tpu_custom_call.1} parent=5 // pred_region
        %s104 = ssub.s32 %s13, 1
      $region12: #{tpu_custom_call.1} parent=5 // pred_fallthru
        _
      %p105 = scmp.lt.s32.totalorder %s13, 2
      // Predicated region
      $region13: #{tpu_custom_call.1} parent=5 // pred_check
        %p106 = pneg %p105
      $region14: #{tpu_custom_call.1} parent=5 // pred_check_branch
        %108 = sbr.rel (%p106) target = $region16
      $region15: #{tpu_custom_call.1} parent=5 // pred_region
        // Predicated region
        $region17: #{tpu_custom_call.1} parent=15 // pred_check
          %p109 = pneg %p56
        $region18: #{tpu_custom_call.1} parent=15 // pred_check_branch
          %111 = sbr.rel (%p109) target = $region20
        $region19: #{tpu_custom_call.1} parent=15 // pred_region
          %s112 = sand.u32 %s46, 1
          %s113 = scalar_lea.sflag [#allocation4], %s112
          %s114 = sand.u32 %s46, 1
          %s115 = smul.addr %s114, 16
          %s116 = scalar_lea.vmem [#allocation3], %s115
          %s117 = smul.u32 2, %s20
          %s119 = ssub.s32 256, 256
          %120 = vsyncadd %s113, %s119
          %s121 = smul.addr %s22, 2
          %s122 = sadd.s32 %s21, %s121
          %s123 = smul.addr %s117, 2
          %s124 = sadd.s32 %s122, %s123
          %s125 = smul.addr %s124, 128
          %s126 = scalar_lea.hbm %s0, %s125
          %s127 = sshll.u32 %s116, 4
          %s128 = int_to_ptr.vmem [resolvable:$true] %s127
          %133 = dma.hbm_to_vmem [thread:$0]  %s126, 256, %s128, %s113, 256, 128, 8
        $region20: #{tpu_custom_call.1} parent=15 // pred_fallthru
          _
      $region16: #{tpu_custom_call.1} parent=5 // pred_fallthru
        _
      %p134 = scmp.le.s32.totalorder 1, %s13
      %p135 = scmp.lt.s32.totalorder %s13, 3
      %p136 = pnand %p134, %p135
      %p137 = pneg %p136
      // Predicated region
      $region21: #{tpu_custom_call.1} parent=5 // pred_check
        _
      $region22: #{tpu_custom_call.1} parent=5 // pred_check_branch
        %139 = sbr.rel (%p136) target = $region24
      $region23: #{tpu_custom_call.1} parent=5 // pred_region
        %s140 = ssub.s32 %s13, 1
        %s141 = sand.u32 %s49, 1
        %s142 = scalar_lea.sflag [#allocation4], %s141
        %s143 = sand.u32 %s49, 1
        %s144 = smul.addr %s143, 16
        %s145 = scalar_lea.vmem [#allocation3], %s144
        // Predicated region
        $region25: #{tpu_custom_call.1} parent=23 // pred_check
          %p146 = pneg %p62
        $region26: #{tpu_custom_call.1} parent=23 // pred_check_branch
          %148 = sbr.rel (%p146) target = $region28
        $region27: #{tpu_custom_call.1} parent=23 // pred_region
          %149 = dma.done %s142, 256
        $region28: #{tpu_custom_call.1} parent=23 // pred_fallthru
          _
        %s150 = sand.u32 %s49, 1
        %s151 = scalar_lea.sflag [#allocation4], %s150
        %s152 = sand.u32 %s49, 1
        %s153 = smul.addr %s152, 16
        %s154 = scalar_lea.vmem [#allocation3], %s153
        %p155 = pneg %p62
        %p156 = pneg %p59
        %p157 = pneg %p90
        %p158 = pneg %p87
        %s159 = sand.u32 %s77, 1
        %s160 = scalar_lea.sflag [#allocation5], %s159
        %s161 = sand.u32 %s77, 1
        %s162 = smul.addr %s161, 2
        %s163 = scalar_lea.vmem [#allocation6], %s162
        %s164 = smul.u32 2, %s23
        %p165 = scmp.eq.s32.totalorder %s25, 0
        // Predicated region
        $region29: #{tpu_custom_call.1} parent=23 // pred_check
          %p166 = pneg %p165
        $region30: #{tpu_custom_call.1} parent=23 // pred_check_branch
          %168 = sbr.rel (%p166) target = $region32
        $region31: #{tpu_custom_call.1} parent=23 // pred_region
          %169 = vst [vmem:[#allocation2] sm:$0xff] 0.0
          %170 = vst [vmem:[#allocation2 + $0x8] sm:$0xff] 0.0
        $region32: #{tpu_custom_call.1} parent=23 // pred_fallthru
          _
        %v171 = vld [vmem:[%s145] sm:$0xff]
        %v172 = vld [vmem:[%s145 + $0x8] sm:$0xff]
        %v173 = vld [vmem:[#allocation2] sm:$0xff]
        %v174 = vld [vmem:[#allocation2 + $0x8] sm:$0xff]
        %v175 = vadd.f32 %v171, 0.0
        %v176 = vadd.f32 %v172, 0.0
        %v177 = vadd.f32 %v173, %v175
        %v178 = vadd.f32 %v174, %v176
        %179 = vst [vmem:[#allocation2] sm:$0xff] %v177
        %180 = vst [vmem:[#allocation2 + $0x8] sm:$0xff] %v178
        // Predicated region
        $region33: #{tpu_custom_call.1} parent=23 // pred_check
          %p181 = pneg %p165
        $region34: #{tpu_custom_call.1} parent=23 // pred_check_branch
          %183 = sbr.rel (%p181) target = $region36
        $region35: #{tpu_custom_call.1} parent=23 // pred_region
          %v184 = vld [vmem:[#allocation2] sm:$0xff]
          %v185 = vld [vmem:[#allocation2 + $0x8] sm:$0xff]
          %v186 = vrot.slane %v184, 4
          %v187 = vadd.f32 %v184, %v186
          %v188 = vrot.slane %v187, 2
          %v189 = vadd.f32 %v187, %v188
          %v190 = vrot.slane %v189, 1
          %v191 = vadd.f32 %v189, %v190
          %v192 = vrot.slane %v185, 4
          %v193 = vadd.f32 %v185, %v192
          %v194 = vrot.slane %v193, 2
          %v195 = vadd.f32 %v193, %v194
          %v196 = vrot.slane %v195, 1
          %v197 = vadd.f32 %v195, %v196
          %v198 = vmul.f32 %v191, 0.125
          %v199 = vmul.f32 %v197, 0.125
          %vm202 = vcmask 1041409
          %v203 = vsel %vm202, %v199, %v198
          %205 = vst [vmem:[%s163] sm:$0x3] %v203
        $region36: #{tpu_custom_call.1} parent=23 // pred_fallthru
          _
        %s206 = sand.u32 %s77, 1
        %s207 = scalar_lea.sflag [#allocation5], %s206
        %s208 = sand.u32 %s77, 1
        %s209 = smul.addr %s208, 2
        %s210 = scalar_lea.vmem [#allocation6], %s209
        // Predicated region
        $region37: #{tpu_custom_call.1} parent=23 // pred_check
          %p211 = pneg %p87
        $region38: #{tpu_custom_call.1} parent=23 // pred_check_branch
          %213 = sbr.rel (%p211) target = $region40
        $region39: #{tpu_custom_call.1} parent=23 // pred_region
          %s215 = ssub.s32 32, 32
          %216 = vsyncadd %s207, %s215
          %s217 = smul.addr %s23, 2
          %s218 = sadd.s32 %s24, %s217
          %s219 = smul.addr %s218, 32
          %s220 = scalar_lea.hbm %s1, %s219
          %s222 = sshll.u32 %s210, 4
          %s223 = int_to_ptr.vmem [resolvable:$true] %s222
          %225 = dma.vmem_to_hbm [thread:$0]  %s223, 32, %s220, %s207
        $region40: #{tpu_custom_call.1} parent=23 // pred_fallthru
          _
      $region24: #{tpu_custom_call.1} parent=5 // pred_fallthru
        _
      %p226 = scmp.le.s32.totalorder 2, %s13
      // Predicated region
      $region41: #{tpu_custom_call.1} parent=5 // pred_check
        %p227 = pneg %p226
      $region42: #{tpu_custom_call.1} parent=5 // pred_check_branch
        %229 = sbr.rel (%p227) target = $region44
      $region43: #{tpu_custom_call.1} parent=5 // pred_region
        %s230 = ssub.s32 %s13, 2
        // Predicated region
        $region45: #{tpu_custom_call.1} parent=43 // pred_check
          %p231 = pneg %p93
        $region46: #{tpu_custom_call.1} parent=43 // pred_check_branch
          %233 = sbr.rel (%p231) target = $region48
        $region47: #{tpu_custom_call.1} parent=43 // pred_region
          %s234 = sand.u32 %s78, 1
          %s235 = scalar_lea.sflag [#allocation5], %s234
          %s236 = sand.u32 %s78, 1
          %s237 = smul.addr %s236, 2
          %s238 = scalar_lea.vmem [#allocation6], %s237
          %239 = dma.done %s235, 32
        $region48: #{tpu_custom_call.1} parent=43 // pred_fallthru
          _
      $region44: #{tpu_custom_call.1} parent=5 // pred_fallthru
        _
    $region6: #{tpu_custom_call.1} parent=1 // loop_footer
      %s17 = sadd.s32 1, %s13
    $region7: #{tpu_custom_call.1} parent=1 // loop_footer_branch
      %12 = sbr.rel target = $region3
    $region8: #{tpu_custom_call.1} parent=1 // loop_exit
      _
    %240 = vsyncpa [#allocation4], 1
    %s241 = scalar_lea.sflag [#allocation4], 1
    %242 = vsyncpa %s241, 1
    %243 = vsyncpa [#allocation5], 1
    %s244 = scalar_lea.sflag [#allocation5], 1
    %245 = vsyncpa %s244, 1

</llo_original>
